<compile_context>
chip_gen: v6e
topology: v6e:2x2x1
jax: 0.10.0
libtpu: 0.0.40
codegen_flags: <defaults>
</compile_context>

<pallas_src>
import jax
import jax.numpy as jnp
from jax.experimental import pallas as pl
from jax.experimental.pallas import tpu as pltpu


def _center_edge_kernel(l_ref, u_ref, c_ref, e_ref):
    l = l_ref[...]
    u = u_ref[...]
    c_ref[...] = (l + u) * 0.5
    e_ref[...] = (u - l) * 0.5


def interval_flatten(l_nchw, u_nchw, *, row_tile=256,
                     lane_candidates=(1024, 512, 256, 128)):
    """Flatten interval bounds (B,C,H,W) -> (B,D) and recompute center/edge.

    Returns (l_flat, u_flat, c_flat, e_flat), each of shape (B, C*H*W).
    l_flat/u_flat are metadata-only reshapes of the inputs (no kernel traffic).
    """
    assert l_nchw.shape == u_nchw.shape
    assert l_nchw.dtype == u_nchw.dtype
    B = l_nchw.shape[0]
    D = 1
    for s in l_nchw.shape[1:]:
        D *= s
    dtype = l_nchw.dtype
    total = B * D

    # (a) The .view(B, -1) flatten — row-major reshape, identical to torch.
    l_flat = l_nchw.reshape(B, D)
    u_flat = u_nchw.reshape(B, D)

    # (b) Re-view the elementwise problem as a (rows, lanes) slab with lanes a
    #     multiple of 128 so vregs/stores are fully dense. Prefer a lane width
    #     that divides the element count exactly (no padding copy); otherwise
    #     pad once and slice the result back.
    lanes = None
    for cand in lane_candidates:
        if total % cand == 0:
            lanes = cand
            break
    if lanes is None:
        lanes = lane_candidates[0]
    rows = pl.cdiv(total, lanes)

    if rows <= row_tile:
        # Single block covering the full array (full-extent block is allowed
        # even if rows is not a multiple of 8).
        row_block = rows
        rows_padded = rows
    else:
        row_block = row_tile
        rows_padded = pl.cdiv(rows, row_tile) * row_tile
    padded_total = rows_padded * lanes

    l1 = l_flat.reshape(-1)
    u1 = u_flat.reshape(-1)
    if padded_total != total:
        pad = padded_total - total
        l1 = jnp.pad(l1, (0, pad))
        u1 = jnp.pad(u1, (0, pad))
    l2 = l1.reshape(rows_padded, lanes)
    u2 = u1.reshape(rows_padded, lanes)

    grid = (rows_padded // row_block,)
    spec = pl.BlockSpec((row_block, lanes), lambda i: (i, 0))
    out_sds = jax.ShapeDtypeStruct((rows_padded, lanes), dtype)

    itemsize = jnp.dtype(dtype).itemsize
    cost = pl.CostEstimate(
        flops=4 * padded_total,                      # add, sub, 2 muls
        transcendentals=0,
        bytes_accessed=4 * padded_total * itemsize,  # 2 reads + 2 writes
    )

    c2, e2 = pl.pallas_call(
        _center_edge_kernel,
        out_shape=(out_sds, out_sds),
        grid_spec=pl.GridSpec(
            grid=grid,
            in_specs=[spec, spec],
            out_specs=(spec, spec),
        ),
        compiler_params=pltpu.CompilerParams(
            dimension_semantics=("parallel",),
        ),
        cost_estimate=cost,
    )(l2, u2)

    if padded_total != total:
        c_flat = c2.reshape(-1)[:total].reshape(B, D)
        e_flat = e2.reshape(-1)[:total].reshape(B, D)
    else:
        c_flat = c2.reshape(B, D)
        e_flat = e2.reshape(B, D)

    return l_flat, u_flat, c_flat, e_flat


if __name__ == "__main__":
    key = jax.random.PRNGKey(0)
    k1, k2 = jax.random.split(key)

    B, C, H, W = 2, 4, 16, 16
    # Build a valid interval: lower <= upper.
    center = jax.random.normal(k1, (B, C, H, W), dtype=jnp.float32)
    radius = jnp.abs(jax.random.normal(k2, (B, C, H, W), dtype=jnp.float32))
    l = center - radius
    u = center + radius

    l_f, u_f, c_f, e_f = jax.block_until_ready(interval_flatten(l, u))

    # Reference (plain JAX) check of the forward semantics.
    D = C * H * W
    l_ref = l.reshape(B, D)
    u_ref = u.reshape(B, D)
    c_ref = (l_ref + u_ref) * 0.5
    e_ref = (u_ref - l_ref) * 0.5

    assert l_f.shape == (B, D) and u_f.shape == (B, D)
    assert c_f.shape == (B, D) and e_f.shape == (B, D)
    assert jnp.allclose(l_f, l_ref, atol=1e-6)
    assert jnp.allclose(u_f, u_ref, atol=1e-6)
    assert jnp.allclose(c_f, c_ref, atol=1e-6)
    assert jnp.allclose(e_f, e_ref, atol=1e-6)

    print("KERNEL_OK")
</pallas_src>

<mosaic_0001>
module attributes {stable_mosaic.version = 11 : i64} {
  func.func @_center_edge_kernel(%arg0: i32, %arg1: memref<2x1024xf32, #tpu.memory_space<vmem>>, %arg2: memref<2x1024xf32, #tpu.memory_space<vmem>>, %arg3: memref<2x1024xf32, #tpu.memory_space<vmem>>, %arg4: memref<2x1024xf32, #tpu.memory_space<vmem>>) attributes {dimension_semantics = [#tpu.dimension_semantics<parallel>], iteration_bounds = array<i64: 1>, scalar_prefetch = 0 : i64, scratch_operands = 0 : i64, tpu.core_type = #tpu.core_type<tc>, window_params = [{transform_indices = @transform_0, window_bounds = array<i64: 2, 1024>}, {transform_indices = @transform_1, window_bounds = array<i64: 2, 1024>}, {transform_indices = @transform_2, window_bounds = array<i64: 2, 1024>}, {transform_indices = @transform_3, window_bounds = array<i64: 2, 1024>}]} {
    %c0 = arith.constant 0 : index
    %c0_0 = arith.constant 0 : index
    %0 = vector.load %arg1[%c0, %c0_0] : memref<2x1024xf32, #tpu.memory_space<vmem>>, vector<2x1024xf32>
    %c0_1 = arith.constant 0 : index
    %c0_2 = arith.constant 0 : index
    %1 = vector.load %arg2[%c0_1, %c0_2] : memref<2x1024xf32, #tpu.memory_space<vmem>>, vector<2x1024xf32>
    %2 = arith.addf %0, %1 : vector<2x1024xf32>
    %cst = arith.constant 5.000000e-01 : f32
    %3 = vector.broadcast %cst : f32 to vector<2x1024xf32>
    %4 = arith.mulf %2, %3 : vector<2x1024xf32>
    %c0_3 = arith.constant 0 : index
    %c0_4 = arith.constant 0 : index
    %5 = vector.load %arg3[%c0_3, %c0_4] : memref<2x1024xf32, #tpu.memory_space<vmem>>, vector<2x1024xf32>
    tpu.vector_store %arg3[%c0_3, %c0_4], %4 {strides = array<i32>} : memref<2x1024xf32, #tpu.memory_space<vmem>>, vector<2x1024xf32>,
    %6 = arith.subf %1, %0 : vector<2x1024xf32>
    %cst_5 = arith.constant 5.000000e-01 : f32
    %7 = vector.broadcast %cst_5 : f32 to vector<2x1024xf32>
    %8 = arith.mulf %6, %7 : vector<2x1024xf32>
    %c0_6 = arith.constant 0 : index
    %c0_7 = arith.constant 0 : index
    %9 = vector.load %arg4[%c0_6, %c0_7] : memref<2x1024xf32, #tpu.memory_space<vmem>>, vector<2x1024xf32>
    tpu.vector_store %arg4[%c0_6, %c0_7], %8 {strides = array<i32>} : memref<2x1024xf32, #tpu.memory_space<vmem>>, vector<2x1024xf32>,
    return
  }
  func.func @transform_0(%arg0: i32) -> (i32, i32) {
    %c0_i32 = arith.constant 0 : i32
    %c0_i32_0 = arith.constant 0 : i32
    return %arg0, %c0_i32 : i32, i32
  }
  func.func @transform_1(%arg0: i32) -> (i32, i32) {
    %c0_i32 = arith.constant 0 : i32
    %c0_i32_0 = arith.constant 0 : i32
    return %arg0, %c0_i32 : i32, i32
  }
  func.func @transform_2(%arg0: i32) -> (i32, i32) {
    %c0_i32 = arith.constant 0 : i32
    %c0_i32_0 = arith.constant 0 : i32
    return %arg0, %c0_i32 : i32, i32
  }
  func.func @transform_3(%arg0: i32) -> (i32, i32) {
    %c0_i32 = arith.constant 0 : i32
    %c0_i32_0 = arith.constant 0 : i32
    return %arg0, %c0_i32 : i32, i32
  }
}

</mosaic_0001>

<llo_original>
// kernel: tpu_custom_call.1
$region0: #{tpu_custom_call.1}
  #allocation0 [shape = 'u32[]', space=smem, size = 0x4, offset = 0x4, fixed_abs, tag = 'smem constant byte address 0x4 - core index']
  #allocation1 [shape = 'u32[144,128]{1,0:T(1,128)}', space=vmem, size = 0x12000, scoped, tag = 'internal scratch']
  %s0 = inlined_call_operand.hbm [shape: f32[2,1024], index: 0, kind: input, shape index: {}]
  %s1 = inlined_call_operand.hbm [shape: f32[2,1024], index: 1, kind: input, shape index: {}]
  %s2 = inlined_call_operand.hbm [shape: f32[2,1024], index: 2, kind: output, shape index: {0}]
  %s3 = inlined_call_operand.hbm [shape: f32[2,1024], index: 3, kind: output, shape index: {1}]
  %4 = xla_tuple %s2, %s3
  %s5 = sld [smem:[#allocation0]]
  $region34: #{tpu_custom_call.1} parent=0
    _
  %s7 = ssub.s32 1, %s5
  %s8 = scalar_select 0, %s7, %s5
  $region1: #{tpu_custom_call.1} parent=0
    #allocation2 [shape = 'u8[8192]{0}', space=vmem, size = 0x2000, scoped, tag = 'input window, operand 0, single buffered']
    #allocation3 [shape = 's32[1]{0}', space=sflag, size = 0x4, scoped, tag = 'scoped memory for tpu_custom_call.1']
    #allocation4 [shape = 's32[1]{0}', space=sflag, size = 0x4, scoped, tag = 'scoped memory for tpu_custom_call.1']
    #allocation5 [shape = 'u8[8192]{0}', space=vmem, size = 0x2000, scoped, tag = 'input window, operand 1, single buffered']
    #allocation6 [shape = 's32[1]{0}', space=sflag, size = 0x4, scoped, tag = 'scoped memory for tpu_custom_call.1']
    #allocation7 [shape = 'u8[8192]{0}', space=vmem, size = 0x2000, scoped, tag = 'output window, operand 0, single buffered']
    #allocation8 [shape = 'u8[8192]{0}', space=vmem, size = 0x2000, scoped, tag = 'output window, operand 1, single buffered']
    #allocation9 [shape = 's32[1]{0}', space=sflag, size = 0x4, scoped, tag = 'scoped memory for tpu_custom_call.1']
    %9 = vsyncpa [#allocation3], 0
    %10 = vsyncpa [#allocation6], 0
    %11 = vsyncpa [#allocation4], 0
    %12 = vsyncpa [#allocation9], 0
    // Predicated region
    $region2: #{tpu_custom_call.1} parent=1 // pred_check
      _
    $region3: #{tpu_custom_call.1} parent=1 // pred_check_branch
      %14 = sbr.rel (0) target = $region5
    $region4: #{tpu_custom_call.1} parent=1 // pred_region
      %s16 = ssub.s32 256, 256
      %17 = vsyncadd [#allocation3], %s16
      %s19 = sshll.u32 [#allocation2], 4
      %s20 = int_to_ptr.vmem [resolvable:$true] %s19
      %22 = dma.hbm_to_vmem [thread:$0]  %s0, 256, %s20, [#allocation3]
    $region5: #{tpu_custom_call.1} parent=1 // pred_fallthru
      _
    // Predicated region
    $region6: #{tpu_custom_call.1} parent=1 // pred_check
      _
    $region7: #{tpu_custom_call.1} parent=1 // pred_check_branch
      %24 = sbr.rel (0) target = $region9
    $region8: #{tpu_custom_call.1} parent=1 // pred_region
      %s26 = ssub.s32 256, 256
      %27 = vsyncadd [#allocation6], %s26
      %s29 = sshll.u32 [#allocation5], 4
      %s30 = int_to_ptr.vmem [resolvable:$true] %s29
      %32 = dma.hbm_to_vmem [thread:$0]  %s1, 256, %s30, [#allocation6]
    $region9: #{tpu_custom_call.1} parent=1 // pred_fallthru
      _
    // Predicated region
    $region10: #{tpu_custom_call.1} parent=1 // pred_check
      _
    $region11: #{tpu_custom_call.1} parent=1 // pred_check_branch
      %34 = sbr.rel (0) target = $region13
    $region12: #{tpu_custom_call.1} parent=1 // pred_region
      %35 = dma.done [#allocation3], 256
    $region13: #{tpu_custom_call.1} parent=1 // pred_fallthru
      _
    // Predicated region
    $region14: #{tpu_custom_call.1} parent=1 // pred_check
      _
    $region15: #{tpu_custom_call.1} parent=1 // pred_check_branch
      %37 = sbr.rel (0) target = $region17
    $region16: #{tpu_custom_call.1} parent=1 // pred_region
      %38 = dma.done [#allocation6], 256
    $region17: #{tpu_custom_call.1} parent=1 // pred_fallthru
      _
    %v39 = vld [vmem:[#allocation2] sm:$0xff]
    %v40 = vld [vmem:[#allocation2 + $0x8] sm:$0xff]
    %v41 = vld [vmem:[#allocation5] sm:$0xff]
    %v42 = vld [vmem:[#allocation5 + $0x8] sm:$0xff]
    %v43 = vadd.f32 %v39, %v41
    %v44 = vadd.f32 %v40, %v42
    %v45 = vmul.f32 %v43, 0.5
    %v46 = vmul.f32 %v44, 0.5
    %47 = vst [vmem:[#allocation7] sm:$0xff] %v45
    %48 = vst [vmem:[#allocation7 + $0x8] sm:$0xff] %v46
    %v49 = vsub.f32 %v41, %v39
    %v50 = vsub.f32 %v42, %v40
    %v51 = vmul.f32 %v49, 0.5
    %v52 = vmul.f32 %v50, 0.5
    %53 = vst [vmem:[#allocation8] sm:$0xff] %v51
    %54 = vst [vmem:[#allocation8 + $0x8] sm:$0xff] %v52
    // Predicated region
    $region18: #{tpu_custom_call.1} parent=1 // pred_check
      _
    $region19: #{tpu_custom_call.1} parent=1 // pred_check_branch
      %56 = sbr.rel (0) target = $region21
    $region20: #{tpu_custom_call.1} parent=1 // pred_region
      %s58 = ssub.s32 256, 256
      %59 = vsyncadd [#allocation4], %s58
      %s61 = sshll.u32 [#allocation7], 4
      %s62 = int_to_ptr.vmem [resolvable:$true] %s61
      %64 = dma.vmem_to_hbm [thread:$0]  %s62, 256, %s2, [#allocation4]
    $region21: #{tpu_custom_call.1} parent=1 // pred_fallthru
      _
    // Predicated region
    $region22: #{tpu_custom_call.1} parent=1 // pred_check
      _
    $region23: #{tpu_custom_call.1} parent=1 // pred_check_branch
      %66 = sbr.rel (0) target = $region25
    $region24: #{tpu_custom_call.1} parent=1 // pred_region
      %s68 = ssub.s32 256, 256
      %69 = vsyncadd [#allocation9], %s68
      %s71 = sshll.u32 [#allocation8], 4
      %s72 = int_to_ptr.vmem [resolvable:$true] %s71
      %74 = dma.vmem_to_hbm [thread:$0]  %s72, 256, %s3, [#allocation9]
    $region25: #{tpu_custom_call.1} parent=1 // pred_fallthru
      _
    // Predicated region
    $region26: #{tpu_custom_call.1} parent=1 // pred_check
      _
    $region27: #{tpu_custom_call.1} parent=1 // pred_check_branch
      %76 = sbr.rel (0) target = $region29
    $region28: #{tpu_custom_call.1} parent=1 // pred_region
      %77 = dma.done [#allocation4], 256
    $region29: #{tpu_custom_call.1} parent=1 // pred_fallthru
      _
    // Predicated region
    $region30: #{tpu_custom_call.1} parent=1 // pred_check
      _
    $region31: #{tpu_custom_call.1} parent=1 // pred_check_branch
      %79 = sbr.rel (0) target = $region33
    $region32: #{tpu_custom_call.1} parent=1 // pred_region
      %80 = dma.done [#allocation9], 256
    $region33: #{tpu_custom_call.1} parent=1 // pred_fallthru
      _
    %81 = vsyncpa [#allocation3], 1
    %82 = vsyncpa [#allocation6], 1
    %83 = vsyncpa [#allocation4], 1
    %84 = vsyncpa [#allocation9], 1

</llo_original>
